<compile_context>
chip_gen: v7x
topology: tpu7x:2x2x1
jax: 0.10.0
libtpu: 0.0.40
codegen_flags: <defaults>
</compile_context>

<pallas_src>
import functools

import jax
import jax.numpy as jnp
from jax.experimental import pallas as pl
from jax.experimental.pallas import tpu as pltpu

N_ACTIONS = 5
N_STATES = N_ACTIONS
H1 = 32
H2 = 64


def mlp_kernel(x_ref, w1_ref, b1_ref, w2_ref, b2_ref, w3_ref, b3_ref, o_ref):
    # fc1 + relu
    h = jnp.dot(x_ref[...], w1_ref[...], preferred_element_type=jnp.float32)
    h = jnp.maximum(h + b1_ref[...], 0.0)
    # hide1 + relu
    h = jnp.dot(h, w2_ref[...], preferred_element_type=jnp.float32)
    h = jnp.maximum(h + b2_ref[...], 0.0)
    # out (no activation)
    o = jnp.dot(h, w3_ref[...], preferred_element_type=jnp.float32)
    o_ref[...] = (o + b3_ref[...]).astype(o_ref.dtype)


def _round_up(n, m):
    return ((n + m - 1) // m) * m


@functools.partial(jax.jit, static_argnames=("max_tile",))
def net_forward(x, params, *, max_tile=512):
    """Forward pass of the DQN Net as a single Pallas kernel.

    x: (B, N_STATES) float32
    params: dict of w1 (5,32), b1 (1,32), w2 (32,64), b2 (1,64), w3 (64,5), b3 (1,5)
    returns: (B, N_ACTIONS) float32
    """
    B = x.shape[0]

    # Batch tile: a multiple of 8 sublanes, capped at max_tile. Pad B up to a
    # multiple of TB so the last grid step has no garbage rows.
    b_pad8 = _round_up(B, 8)
    TB = min(max_tile, b_pad8)
    B_padded = _round_up(B, TB)
    if B_padded != B:
        x = jnp.pad(x, ((0, B_padded - B), (0, 0)))

    grid = (B_padded // TB,)

    # x / out tile along the batch; weights & biases are full-array, VMEM-resident
    # across the whole grid (constant index maps => fetched once).
    x_spec = pl.BlockSpec((TB, N_STATES), lambda i: (i, 0))
    out_spec = pl.BlockSpec((TB, N_ACTIONS), lambda i: (i, 0))
    w1_spec = pl.BlockSpec((N_STATES, H1), lambda i: (0, 0))
    b1_spec = pl.BlockSpec((1, H1), lambda i: (0, 0))
    w2_spec = pl.BlockSpec((H1, H2), lambda i: (0, 0))
    b2_spec = pl.BlockSpec((1, H2), lambda i: (0, 0))
    w3_spec = pl.BlockSpec((H2, N_ACTIONS), lambda i: (0, 0))
    b3_spec = pl.BlockSpec((1, N_ACTIONS), lambda i: (0, 0))

    flops = 2 * B_padded * (N_STATES * H1 + H1 * H2 + H2 * N_ACTIONS)
    weight_bytes = 4 * (N_STATES * H1 + H1 + H1 * H2 + H2 + H2 * N_ACTIONS + N_ACTIONS)
    bytes_accessed = 4 * B_padded * (N_STATES + N_ACTIONS) + weight_bytes

    out_padded = pl.pallas_call(
        mlp_kernel,
        out_shape=jax.ShapeDtypeStruct((B_padded, N_ACTIONS), jnp.float32),
        grid=grid,
        in_specs=[x_spec, w1_spec, b1_spec, w2_spec, b2_spec, w3_spec, b3_spec],
        out_specs=out_spec,
        compiler_params=pltpu.CompilerParams(
            dimension_semantics=("parallel",),
        ),
        cost_estimate=pl.CostEstimate(
            flops=flops, transcendentals=0, bytes_accessed=bytes_accessed
        ),
    )(
        x,
        params["w1"], params["b1"],
        params["w2"], params["b2"],
        params["w3"], params["b3"],
    )

    return out_padded[:B]


def init_params(key):
    k1, k2, k3, k4, k5, k6 = jax.random.split(key, 6)
    # Matches the PyTorch module's shapes; weights drawn N(0, 0.1) like
    # weight.data.normal_(0, 0.1); biases random small values.
    return {
        "w1": 0.1 * jax.random.normal(k1, (N_STATES, H1), jnp.float32),
        "b1": 0.1 * jax.random.normal(k2, (1, H1), jnp.float32),
        "w2": 0.1 * jax.random.normal(k3, (H1, H2), jnp.float32),
        "b2": 0.1 * jax.random.normal(k4, (1, H2), jnp.float32),
        "w3": 0.1 * jax.random.normal(k5, (H2, N_ACTIONS), jnp.float32),
        "b3": 0.1 * jax.random.normal(k6, (1, N_ACTIONS), jnp.float32),
    }


def net_forward_ref(x, params):
    h = jnp.maximum(x @ params["w1"] + params["b1"], 0.0)
    h = jnp.maximum(h @ params["w2"] + params["b2"], 0.0)
    return h @ params["w3"] + params["b3"]


if __name__ == "__main__":
    key = jax.random.PRNGKey(0)
    pkey, xkey, xkey2 = jax.random.split(key, 3)
    params = init_params(pkey)

    # Small inference-style batch (B=2); wrapper pads to 8 sublanes internally.
    B = 2
    x = jax.random.normal(xkey, (B, N_STATES), jnp.float32)
    out = jax.block_until_ready(net_forward(x, params))
    ref = net_forward_ref(x, params)
    assert out.shape == (B, N_ACTIONS)
    assert jnp.allclose(out, ref, atol=1e-5, rtol=1e-5)

    # Larger, non-multiple-of-tile batch to exercise the batch grid + padding path.
    B2 = 1000
    x2 = jax.random.normal(xkey2, (B2, N_STATES), jnp.float32)
    out2 = jax.block_until_ready(net_forward(x2, params))
    ref2 = net_forward_ref(x2, params)
    assert out2.shape == (B2, N_ACTIONS)
    assert jnp.allclose(out2, ref2, atol=1e-4, rtol=1e-4)

    print("KERNEL_OK")
</pallas_src>

<mosaic_0001>
module attributes {stable_mosaic.version = 11 : i64} {
  func.func @mlp_kernel(%arg0: i32, %arg1: memref<8x5xf32, #tpu.memory_space<vmem>>, %arg2: memref<5x32xf32, #tpu.memory_space<vmem>>, %arg3: memref<1x32xf32, #tpu.memory_space<vmem>>, %arg4: memref<32x64xf32, #tpu.memory_space<vmem>>, %arg5: memref<1x64xf32, #tpu.memory_space<vmem>>, %arg6: memref<64x5xf32, #tpu.memory_space<vmem>>, %arg7: memref<1x5xf32, #tpu.memory_space<vmem>>, %arg8: memref<8x5xf32, #tpu.memory_space<vmem>>) attributes {dimension_semantics = [#tpu.dimension_semantics<parallel>], iteration_bounds = array<i64: 1>, scalar_prefetch = 0 : i64, scratch_operands = 0 : i64, tpu.core_type = #tpu.core_type<tc>, window_params = [{transform_indices = @transform_0, window_bounds = array<i64: 8, 5>}, {pipeline_mode = #tpu.pipeline_mode<synchronous>, transform_indices = @transform_1, window_bounds = array<i64: 5, 32>}, {pipeline_mode = #tpu.pipeline_mode<synchronous>, transform_indices = @transform_2, window_bounds = array<i64: 1, 32>}, {pipeline_mode = #tpu.pipeline_mode<synchronous>, transform_indices = @transform_3, window_bounds = array<i64: 32, 64>}, {pipeline_mode = #tpu.pipeline_mode<synchronous>, transform_indices = @transform_4, window_bounds = array<i64: 1, 64>}, {pipeline_mode = #tpu.pipeline_mode<synchronous>, transform_indices = @transform_5, window_bounds = array<i64: 64, 5>}, {pipeline_mode = #tpu.pipeline_mode<synchronous>, transform_indices = @transform_6, window_bounds = array<i64: 1, 5>}, {transform_indices = @transform_7, window_bounds = array<i64: 8, 5>}]} {
    %c0 = arith.constant 0 : index
    %c0_0 = arith.constant 0 : index
    %0 = vector.load %arg1[%c0, %c0_0] : memref<8x5xf32, #tpu.memory_space<vmem>>, vector<8x5xf32>
    %c0_1 = arith.constant 0 : index
    %c0_2 = arith.constant 0 : index
    %1 = vector.load %arg2[%c0_1, %c0_2] : memref<5x32xf32, #tpu.memory_space<vmem>>, vector<5x32xf32>
    %cst = arith.constant dense<0.000000e+00> : vector<8x32xf32>
    %2 = tpu.matmul %0, %1, %cst {dimension_numbers = #tpu.dot_dimension_numbers<[1], [0], [0], [1], [0, 0, 1, 1], [], []>} : vector<8x5xf32>, vector<5x32xf32>, vector<8x32xf32> -> vector<8x32xf32>
    %c0_3 = arith.constant 0 : index
    %c0_4 = arith.constant 0 : index
    %3 = vector.load %arg3[%c0_3, %c0_4] : memref<1x32xf32, #tpu.memory_space<vmem>>, vector<1x32xf32>
    %4 = vector.broadcast %3 : vector<1x32xf32> to vector<8x32xf32>
    %5 = arith.addf %2, %4 : vector<8x32xf32>
    %cst_5 = arith.constant 0.000000e+00 : f32
    %6 = vector.broadcast %cst_5 : f32 to vector<8x32xf32>
    %7 = arith.maximumf %5, %6 : vector<8x32xf32>
    %c0_6 = arith.constant 0 : index
    %c0_7 = arith.constant 0 : index
    %8 = vector.load %arg4[%c0_6, %c0_7] : memref<32x64xf32, #tpu.memory_space<vmem>>, vector<32x64xf32>
    %cst_8 = arith.constant dense<0.000000e+00> : vector<8x64xf32>
    %9 = tpu.matmul %7, %8, %cst_8 {dimension_numbers = #tpu.dot_dimension_numbers<[1], [0], [0], [1], [0, 0, 1, 1], [], []>} : vector<8x32xf32>, vector<32x64xf32>, vector<8x64xf32> -> vector<8x64xf32>
    %c0_9 = arith.constant 0 : index
    %c0_10 = arith.constant 0 : index
    %10 = vector.load %arg5[%c0_9, %c0_10] : memref<1x64xf32, #tpu.memory_space<vmem>>, vector<1x64xf32>
    %11 = vector.broadcast %10 : vector<1x64xf32> to vector<8x64xf32>
    %12 = arith.addf %9, %11 : vector<8x64xf32>
    %cst_11 = arith.constant 0.000000e+00 : f32
    %13 = vector.broadcast %cst_11 : f32 to vector<8x64xf32>
    %14 = arith.maximumf %12, %13 : vector<8x64xf32>
    %c0_12 = arith.constant 0 : index
    %c0_13 = arith.constant 0 : index
    %15 = vector.load %arg6[%c0_12, %c0_13] : memref<64x5xf32, #tpu.memory_space<vmem>>, vector<64x5xf32>
    %cst_14 = arith.constant dense<0.000000e+00> : vector<8x5xf32>
    %16 = tpu.matmul %14, %15, %cst_14 {dimension_numbers = #tpu.dot_dimension_numbers<[1], [0], [0], [1], [0, 0, 1, 1], [], []>} : vector<8x64xf32>, vector<64x5xf32>, vector<8x5xf32> -> vector<8x5xf32>
    %c0_15 = arith.constant 0 : index
    %c0_16 = arith.constant 0 : index
    %17 = vector.load %arg7[%c0_15, %c0_16] : memref<1x5xf32, #tpu.memory_space<vmem>>, vector<1x5xf32>
    %18 = vector.broadcast %17 : vector<1x5xf32> to vector<8x5xf32>
    %19 = arith.addf %16, %18 : vector<8x5xf32>
    %c0_17 = arith.constant 0 : index
    %c0_18 = arith.constant 0 : index
    %20 = vector.load %arg8[%c0_17, %c0_18] : memref<8x5xf32, #tpu.memory_space<vmem>>, vector<8x5xf32>
    tpu.vector_store %arg8[%c0_17, %c0_18], %19 {strides = array<i32>} : memref<8x5xf32, #tpu.memory_space<vmem>>, vector<8x5xf32>,
    return
  }
  func.func @transform_0(%arg0: i32) -> (i32, i32) {
    %c0_i32 = arith.constant 0 : i32
    %c0_i32_0 = arith.constant 0 : i32
    return %arg0, %c0_i32 : i32, i32
  }
  func.func @transform_1(%arg0: i32) -> (i32, i32) {
    %c0_i32 = arith.constant 0 : i32
    %c0_i32_0 = arith.constant 0 : i32
    %c0_i32_1 = arith.constant 0 : i32
    return %c0_i32, %c0_i32_0 : i32, i32
  }
  func.func @transform_2(%arg0: i32) -> (i32, i32) {
    %c0_i32 = arith.constant 0 : i32
    %c0_i32_0 = arith.constant 0 : i32
    %c0_i32_1 = arith.constant 0 : i32
    return %c0_i32, %c0_i32_0 : i32, i32
  }
  func.func @transform_3(%arg0: i32) -> (i32, i32) {
    %c0_i32 = arith.constant 0 : i32
    %c0_i32_0 = arith.constant 0 : i32
    %c0_i32_1 = arith.constant 0 : i32
    return %c0_i32, %c0_i32_0 : i32, i32
  }
  func.func @transform_4(%arg0: i32) -> (i32, i32) {
    %c0_i32 = arith.constant 0 : i32
    %c0_i32_0 = arith.constant 0 : i32
    %c0_i32_1 = arith.constant 0 : i32
    return %c0_i32, %c0_i32_0 : i32, i32
  }
  func.func @transform_5(%arg0: i32) -> (i32, i32) {
    %c0_i32 = arith.constant 0 : i32
    %c0_i32_0 = arith.constant 0 : i32
    %c0_i32_1 = arith.constant 0 : i32
    return %c0_i32, %c0_i32_0 : i32, i32
  }
  func.func @transform_6(%arg0: i32) -> (i32, i32) {
    %c0_i32 = arith.constant 0 : i32
    %c0_i32_0 = arith.constant 0 : i32
    %c0_i32_1 = arith.constant 0 : i32
    return %c0_i32, %c0_i32_0 : i32, i32
  }
  func.func @transform_7(%arg0: i32) -> (i32, i32) {
    %c0_i32 = arith.constant 0 : i32
    %c0_i32_0 = arith.constant 0 : i32
    return %arg0, %c0_i32 : i32, i32
  }
}

</mosaic_0001>

<llo_original>
// kernel: net_forward.1
$region0: #{net_forward.1}
  #allocation0 [shape = 'u32[]', space=smem, size = 0x4, offset = 0x4, fixed_abs, tag = 'smem constant byte address 0x4 - core index']
  #allocation1 [shape = 'u32[144,128]{1,0:T(1,128)}', space=vmem, size = 0x12000, scoped, tag = 'internal scratch']
  %s0 = inlined_call_operand.vmem [shape: f32[8,5], index: 0, kind: input, shape index: {}]
  %s1 = inlined_call_operand.vmem [shape: f32[5,32], index: 1, kind: input, shape index: {}]
  %s2 = inlined_call_operand.vmem [shape: f32[1,32], index: 2, kind: input, shape index: {}]
  %s3 = inlined_call_operand.vmem [shape: f32[32,64], index: 3, kind: input, shape index: {}]
  %s4 = inlined_call_operand.vmem [shape: f32[1,64], index: 4, kind: input, shape index: {}]
  %s5 = inlined_call_operand.vmem [shape: f32[64,5], index: 5, kind: input, shape index: {}]
  %s6 = inlined_call_operand.vmem [shape: f32[1,5], index: 6, kind: input, shape index: {}]
  %s7 = inlined_call_operand.vmem [shape: f32[8,5], index: 7, kind: output, shape index: {}]
  %s8 = sld [smem:[#allocation0]]
  $region38: #{net_forward.1} parent=0
    _
  %s10 = ssub.s32 1, %s8
  %s11 = scalar_select 0, %s10, %s8
  // Predicated region
  $region2: #{net_forward.1} parent=0 // pred_check
    _
  $region3: #{net_forward.1} parent=0 // pred_check_branch
    %13 = sbr.rel (0) target = $region5
  $region4: #{net_forward.1} parent=0 // pred_region
    _
  $region5: #{net_forward.1} parent=0 // pred_fallthru
    _
  // Predicated region
  $region6: #{net_forward.1} parent=0 // pred_check
    _
  $region7: #{net_forward.1} parent=0 // pred_check_branch
    %15 = sbr.rel (0) target = $region9
  $region8: #{net_forward.1} parent=0 // pred_region
    _
  $region9: #{net_forward.1} parent=0 // pred_fallthru
    _
  // Predicated region
  $region10: #{net_forward.1} parent=0 // pred_check
    _
  $region11: #{net_forward.1} parent=0 // pred_check_branch
    %17 = sbr.rel (0) target = $region13
  $region12: #{net_forward.1} parent=0 // pred_region
    _
  $region13: #{net_forward.1} parent=0 // pred_fallthru
    _
  // Predicated region
  $region14: #{net_forward.1} parent=0 // pred_check
    _
  $region15: #{net_forward.1} parent=0 // pred_check_branch
    %19 = sbr.rel (0) target = $region17
  $region16: #{net_forward.1} parent=0 // pred_region
    _
  $region17: #{net_forward.1} parent=0 // pred_fallthru
    _
  // Predicated region
  $region18: #{net_forward.1} parent=0 // pred_check
    _
  $region19: #{net_forward.1} parent=0 // pred_check_branch
    %21 = sbr.rel (0) target = $region21
  $region20: #{net_forward.1} parent=0 // pred_region
    _
  $region21: #{net_forward.1} parent=0 // pred_fallthru
    _
  // Predicated region
  $region22: #{net_forward.1} parent=0 // pred_check
    _
  $region23: #{net_forward.1} parent=0 // pred_check_branch
    %23 = sbr.rel (0) target = $region25
  $region24: #{net_forward.1} parent=0 // pred_region
    _
  $region25: #{net_forward.1} parent=0 // pred_fallthru
    _
  // Predicated region
  $region26: #{net_forward.1} parent=0 // pred_check
    _
  $region27: #{net_forward.1} parent=0 // pred_check_branch
    %25 = sbr.rel (0) target = $region29
  $region28: #{net_forward.1} parent=0 // pred_region
    _
  $region29: #{net_forward.1} parent=0 // pred_fallthru
    _
  %v26 = vld [vmem:[%s0] sm:$0xff]
  %v27 = vld [vmem:[%s1] sm:$0x1f]
  %v28 = vld [vmem:[%s2] sm:$0x1]
  %v30 = vlaneseq
  %v31 = vshrl.u32 %v30, 7
  %v32 = vsub.s32 0, %v31
  %v33 = vrot.slane %v28, %v32
  %vm35 = vcmask 39936
  %v37 = vsel %vm35, %v26, 0
  %vm39 = vcmask 1044480
  %v41 = vsel %vm39, %v27, 0
  %43 = vmatprep.subr.mxu0 0.0
  %44 = vmatpush1.msra.mxu0 %v41
  %45 = vmatprep.subr.mxu0 0.0
  %46 = vmatpush1.msra.mxu0 0.0
  %47 = vmatprep.subr.mxu0 0.0
  %48 = vmatpush1.msra.mxu0 0.0
  %49 = vmatprep.subr.mxu0 0.0
  %50 = vmatpush1.msra.mxu0 0.0
  %51 = vmatprep.subr.mxu0 0.0
  %52 = vmatpush1.msra.mxu0 0.0
  %53 = vmatprep.subr.mxu0 0.0
  %54 = vmatpush1.msra.mxu0 0.0
  %55 = vmatprep.subr.mxu0 0.0
  %56 = vmatpush1.msra.mxu0 0.0
  %57 = vmatprep.subr.mxu0 0.0
  %58 = vmatpush1.msra.mxu0 0.0
  %59 = vmatprep.subr.mxu0 0.0
  %60 = vmatpush1.msra.mxu0 0.0
  %61 = vmatprep.subr.mxu0 0.0
  %62 = vmatpush1.msra.mxu0 0.0
  %63 = vmatprep.subr.mxu0 0.0
  %64 = vmatpush1.msra.mxu0 0.0
  %65 = vmatprep.subr.mxu0 0.0
  %66 = vmatpush1.msra.mxu0 0.0
  %67 = vmatprep.subr.mxu0 0.0
  %68 = vmatpush1.msra.mxu0 0.0
  %69 = vmatprep.subr.mxu0 0.0
  %70 = vmatpush1.msra.mxu0 0.0
  %71 = vmatprep.subr.mxu0 0.0
  %72 = vmatpush1.msra.mxu0 0.0
  %73 = vmatprep.subr.mxu0 0.0
  %74 = vmatpush1.msra.mxu0 0.0
  %75 = vmatprep.subr.mxu0 0.0
  %76 = vmatpush1.msra.mxu0 0.0
  %77 = vmatprep.subr.mxu0 0.0
  %78 = vmatpush1.msra.mxu0 0.0
  %79 = vmatprep.subr.mxu0 0.0
  %80 = vmatpush1.msra.mxu0 0.0
  %81 = vmatprep.subr.mxu0 0.0
  %82 = vmatpush1.msra.mxu0 0.0
  %83 = vmatprep.subr.mxu0 0.0
  %84 = vmatpush1.msra.mxu0 0.0
  %85 = vmatprep.subr.mxu0 0.0
  %86 = vmatpush1.msra.mxu0 0.0
  %87 = vmatprep.subr.mxu0 0.0
  %88 = vmatpush1.msra.mxu0 0.0
  %89 = vmatprep.subr.mxu0 0.0
  %90 = vmatpush1.msra.mxu0 0.0
  %91 = vmatprep.subr.mxu0 0.0
  %92 = vmatpush1.msra.mxu0 0.0
  %93 = vmatprep.subr.mxu0 0.0
  %94 = vmatpush1.msra.mxu0 0.0
  %95 = vmatprep.subr.mxu0 0.0
  %96 = vmatpush1.msra.mxu0 0.0
  %97 = vmatprep.subr.mxu0 0.0
  %98 = vmatpush1.msra.mxu0 0.0
  %99 = vmatprep.subr.mxu0 0.0
  %100 = vmatpush1.msra.mxu0 0.0
  %101 = vmatprep.subr.mxu0 0.0
  %102 = vmatpush1.msra.mxu0 0.0
  %103 = vmatprep.subr.mxu0 0.0
  %104 = vmatpush1.msra.mxu0 0.0
  %105 = vmatprep.subr.mxu0 0.0
  %106 = vmatpush1.msra.mxu0 0.0
  %107 = vmatprep.mubr.f32.mxu0 0.0
  %108 = vmatmul.mubr.f32.gmra.mrb[0].mxu0 %v37
  %v109 = vpop.f32.mrb[0].mxu0
  %v110 = vadd.f32 %v33, %v109
  %v111 = vpop.f32.mrb[0].mxu0
  %112 = vdwg.mxu0
  %v113 = vmax.f32 %v110, 0.0
  %v114 = vld [vmem:[%s3] sm:$0xff]
  %v115 = vld [vmem:[%s3 + $0x8] sm:$0xff]
  %v116 = vld [vmem:[%s3 + $0x10] sm:$0xff]
  %v117 = vld [vmem:[%s3 + $0x18] sm:$0xff]
  %v118 = vld [vmem:[%s4] sm:$0x1]
  %v120 = vlaneseq
  %v121 = vshrl.u32 %v120, 7
  %v122 = vsub.s32 0, %v121
  %v123 = vrot.slane %v118, %v122
  %vm125 = vcmask 261120
  %v127 = vsel %vm125, %v113, 0
  %129 = vmatprep.subr.mxu0 0.0
  %130 = vmatpush1.msra.mxu0 %v114
  %131 = vmatprep.subr.mxu0 0.0
  %132 = vmatpush1.msra.mxu0 %v115
  %133 = vmatprep.subr.mxu0 0.0
  %134 = vmatpush1.msra.mxu0 %v116
  %135 = vmatprep.subr.mxu0 0.0
  %136 = vmatpush1.msra.mxu0 %v117
  %137 = vmatprep.subr.mxu0 0.0
  %138 = vmatpush1.msra.mxu0 0.0
  %139 = vmatprep.subr.mxu0 0.0
  %140 = vmatpush1.msra.mxu0 0.0
  %141 = vmatprep.subr.mxu0 0.0
  %142 = vmatpush1.msra.mxu0 0.0
  %143 = vmatprep.subr.mxu0 0.0
  %144 = vmatpush1.msra.mxu0 0.0
  %145 = vmatprep.subr.mxu0 0.0
  %146 = vmatpush1.msra.mxu0 0.0
  %147 = vmatprep.subr.mxu0 0.0
  %148 = vmatpush1.msra.mxu0 0.0
  %149 = vmatprep.subr.mxu0 0.0
  %150 = vmatpush1.msra.mxu0 0.0
  %151 = vmatprep.subr.mxu0 0.0
  %152 = vmatpush1.msra.mxu0 0.0
  %153 = vmatprep.subr.mxu0 0.0
  %154 = vmatpush1.msra.mxu0 0.0
  %155 = vmatprep.subr.mxu0 0.0
  %156 = vmatpush1.msra.mxu0 0.0
  %157 = vmatprep.subr.mxu0 0.0
  %158 = vmatpush1.msra.mxu0 0.0
  %159 = vmatprep.subr.mxu0 0.0
  %160 = vmatpush1.msra.mxu0 0.0
  %161 = vmatprep.subr.mxu0 0.0
  %162 = vmatpush1.msra.mxu0 0.0
  %163 = vmatprep.subr.mxu0 0.0
  %164 = vmatpush1.msra.mxu0 0.0
  %165 = vmatprep.subr.mxu0 0.0
  %166 = vmatpush1.msra.mxu0 0.0
  %167 = vmatprep.subr.mxu0 0.0
  %168 = vmatpush1.msra.mxu0 0.0
  %169 = vmatprep.subr.mxu0 0.0
  %170 = vmatpush1.msra.mxu0 0.0
  %171 = vmatprep.subr.mxu0 0.0
  %172 = vmatpush1.msra.mxu0 0.0
  %173 = vmatprep.subr.mxu0 0.0
  %174 = vmatpush1.msra.mxu0 0.0
  %175 = vmatprep.subr.mxu0 0.0
  %176 = vmatpush1.msra.mxu0 0.0
  %177 = vmatprep.subr.mxu0 0.0
  %178 = vmatpush1.msra.mxu0 0.0
  %179 = vmatprep.subr.mxu0 0.0
  %180 = vmatpush1.msra.mxu0 0.0
  %181 = vmatprep.subr.mxu0 0.0
  %182 = vmatpush1.msra.mxu0 0.0
  %183 = vmatprep.subr.mxu0 0.0
  %184 = vmatpush1.msra.mxu0 0.0
  %185 = vmatprep.subr.mxu0 0.0
  %186 = vmatpush1.msra.mxu0 0.0
  %187 = vmatprep.subr.mxu0 0.0
  %188 = vmatpush1.msra.mxu0 0.0
  %189 = vmatprep.subr.mxu0 0.0
  %190 = vmatpush1.msra.mxu0 0.0
  %191 = vmatprep.subr.mxu0 0.0
  %192 = vmatpush1.msra.mxu0 0.0
  %193 = vmatprep.mubr.f32.mxu0 0.0
  %194 = vmatmul.mubr.f32.gmra.mrb[0].mxu0 %v127
  %v195 = vpop.f32.mrb[0].mxu0
  %v196 = vadd.f32 %v123, %v195
  %v197 = vpop.f32.mrb[0].mxu0
  %198 = vdwg.mxu0
  %v199 = vmax.f32 %v196, 0.0
  %v200 = vld [vmem:[%s5] sm:$0xff]
  %v201 = vld [vmem:[%s5 + $0x8] sm:$0xff]
  %v202 = vld [vmem:[%s5 + $0x10] sm:$0xff]
  %v203 = vld [vmem:[%s5 + $0x18] sm:$0xff]
  %v204 = vld [vmem:[%s5 + $0x20] sm:$0xff]
  %v205 = vld [vmem:[%s5 + $0x28] sm:$0xff]
  %v206 = vld [vmem:[%s5 + $0x30] sm:$0xff]
  %v207 = vld [vmem:[%s5 + $0x38] sm:$0xff]
  %v208 = vld [vmem:[%s6] sm:$0x1]
  %v210 = vlaneseq
  %v211 = vshrl.u32 %v210, 7
  %v212 = vsub.s32 0, %v211
  %v213 = vrot.slane %v208, %v212
  %vm215 = vcmask 523264
  %v217 = vsel %vm215, %v199, 0
  %219 = vmatprep.subr.mxu0 0.0
  %220 = vmatpush1.msra.mxu0 %v200
  %221 = vmatprep.subr.mxu0 0.0
  %222 = vmatpush1.msra.mxu0 %v201
  %223 = vmatprep.subr.mxu0 0.0
  %224 = vmatpush1.msra.mxu0 %v202
  %225 = vmatprep.subr.mxu0 0.0
  %226 = vmatpush1.msra.mxu0 %v203
  %227 = vmatprep.subr.mxu0 0.0
  %228 = vmatpush1.msra.mxu0 %v204
  %229 = vmatprep.subr.mxu0 0.0
  %230 = vmatpush1.msra.mxu0 %v205
  %231 = vmatprep.subr.mxu0 0.0
  %232 = vmatpush1.msra.mxu0 %v206
  %233 = vmatprep.subr.mxu0 0.0
  %234 = vmatpush1.msra.mxu0 %v207
  %235 = vmatprep.subr.mxu0 0.0
  %236 = vmatpush1.msra.mxu0 0.0
  %237 = vmatprep.subr.mxu0 0.0
  %238 = vmatpush1.msra.mxu0 0.0
  %239 = vmatprep.subr.mxu0 0.0
  %240 = vmatpush1.msra.mxu0 0.0
  %241 = vmatprep.subr.mxu0 0.0
  %242 = vmatpush1.msra.mxu0 0.0
  %243 = vmatprep.subr.mxu0 0.0
  %244 = vmatpush1.msra.mxu0 0.0
  %245 = vmatprep.subr.mxu0 0.0
  %246 = vmatpush1.msra.mxu0 0.0
  %247 = vmatprep.subr.mxu0 0.0
  %248 = vmatpush1.msra.mxu0 0.0
  %249 = vmatprep.subr.mxu0 0.0
  %250 = vmatpush1.msra.mxu0 0.0
  %251 = vmatprep.subr.mxu0 0.0
  %252 = vmatpush1.msra.mxu0 0.0
  %253 = vmatprep.subr.mxu0 0.0
  %254 = vmatpush1.msra.mxu0 0.0
  %255 = vmatprep.subr.mxu0 0.0
  %256 = vmatpush1.msra.mxu0 0.0
  %257 = vmatprep.subr.mxu0 0.0
  %258 = vmatpush1.msra.mxu0 0.0
  %259 = vmatprep.subr.mxu0 0.0
  %260 = vmatpush1.msra.mxu0 0.0
  %261 = vmatprep.subr.mxu0 0.0
  %262 = vmatpush1.msra.mxu0 0.0
  %263 = vmatprep.subr.mxu0 0.0
  %264 = vmatpush1.msra.mxu0 0.0
  %265 = vmatprep.subr.mxu0 0.0
  %266 = vmatpush1.msra.mxu0 0.0
  %267 = vmatprep.subr.mxu0 0.0
  %268 = vmatpush1.msra.mxu0 0.0
  %269 = vmatprep.subr.mxu0 0.0
  %270 = vmatpush1.msra.mxu0 0.0
  %271 = vmatprep.subr.mxu0 0.0
  %272 = vmatpush1.msra.mxu0 0.0
  %273 = vmatprep.subr.mxu0 0.0
  %274 = vmatpush1.msra.mxu0 0.0
  %275 = vmatprep.subr.mxu0 0.0
  %276 = vmatpush1.msra.mxu0 0.0
  %277 = vmatprep.subr.mxu0 0.0
  %278 = vmatpush1.msra.mxu0 0.0
  %279 = vmatprep.subr.mxu0 0.0
  %280 = vmatpush1.msra.mxu0 0.0
  %281 = vmatprep.subr.mxu0 0.0
  %282 = vmatpush1.msra.mxu0 0.0
  %283 = vmatprep.mubr.f32.mxu0 0.0
  %284 = vmatmul.mubr.f32.gmra.mrb[0].mxu0 %v217
  %v285 = vpop.f32.mrb[0].mxu0
  %v286 = vadd.f32 %v213, %v285
  %v287 = vpop.f32.mrb[0].mxu0
  %288 = vdwg.mxu0
  %289 = vst.msk [vmem:[%s7] sm:$0xff] %vm35, %v286
  // Predicated region
  $region30: #{net_forward.1} parent=0 // pred_check
    _
  $region31: #{net_forward.1} parent=0 // pred_check_branch
    %291 = sbr.rel (0) target = $region33
  $region32: #{net_forward.1} parent=0 // pred_region
    _
  $region33: #{net_forward.1} parent=0 // pred_fallthru
    _
  // Predicated region
  $region34: #{net_forward.1} parent=0 // pred_check
    _
  $region35: #{net_forward.1} parent=0 // pred_check_branch
    %293 = sbr.rel (0) target = $region37
  $region36: #{net_forward.1} parent=0 // pred_region
    _
  $region37: #{net_forward.1} parent=0 // pred_fallthru
    _

</llo_original>
